<compile_context>
chip_gen: v6e
topology: v6e:2x2x1
jax: 0.10.0
libtpu: 0.0.40
codegen_flags: <defaults>
</compile_context>

<pallas_src>
import functools

import jax
import jax.numpy as jnp
from jax.experimental import pallas as pl
from jax.experimental.pallas import tpu as pltpu


def _scalar_add_kernel(a_ref, b_ref, o_ref):
    # Pure scalar-path add: SMEM -> sreg -> SMEM.  No vregs involved.
    o_ref[0, 0] = a_ref[0, 0] + b_ref[0, 0]


@jax.jit
def module_forward(x, a, b):
    """Reproduces Module.forward: returns a + b (shape (1,), f32); x is unused."""
    del x  # forward ignores its input, exactly as in the PyTorch module
    a2 = a.reshape(1, 1).astype(jnp.float32)
    b2 = b.reshape(1, 1).astype(jnp.float32)
    out = pl.pallas_call(
        _scalar_add_kernel,
        out_shape=jax.ShapeDtypeStruct((1, 1), jnp.float32),
        in_specs=[
            pl.BlockSpec(memory_space=pltpu.SMEM),
            pl.BlockSpec(memory_space=pltpu.SMEM),
        ],
        out_specs=pl.BlockSpec(memory_space=pltpu.SMEM),
    )(a2, b2)
    return out.reshape(1)  # match torch shape: tensor([3.3]) -> (1,)


if __name__ == "__main__":
    key = jax.random.PRNGKey(0)
    # Deterministic parameters mirroring the module's __init__.
    a = jnp.array([1.1], dtype=jnp.float32)
    b = jnp.array([2.2], dtype=jnp.float32)
    # Example input (ignored by forward, as in the PyTorch module).
    x = jax.random.normal(key, (2, 4, 16, 16), dtype=jnp.float32)

    out = module_forward(x, a, b)
    out = jax.block_until_ready(out)

    expected = a + b
    assert out.shape == (1,), out.shape
    assert jnp.allclose(out, expected, rtol=1e-6, atol=1e-6), (out, expected)
    print("KERNEL_OK")
</pallas_src>

<mosaic_0001>
module attributes {stable_mosaic.version = 11 : i64} {
  func.func @_scalar_add_kernel(%arg0: memref<1x1xf32, #tpu.memory_space<smem>>, %arg1: memref<1x1xf32, #tpu.memory_space<smem>>, %arg2: memref<1x1xf32, #tpu.memory_space<smem>>) attributes {dimension_semantics = [], scalar_prefetch = 0 : i64, scratch_operands = 0 : i64, tpu.core_type = #tpu.core_type<tc>} {
    %c0 = arith.constant 0 : index
    %c0_0 = arith.constant 0 : index
    %0 = memref.load %arg0[%c0, %c0_0] : memref<1x1xf32, #tpu.memory_space<smem>>
    %c0_1 = arith.constant 0 : index
    %c0_2 = arith.constant 0 : index
    %1 = memref.load %arg1[%c0_1, %c0_2] : memref<1x1xf32, #tpu.memory_space<smem>>
    %2 = arith.addf %0, %1 : f32
    %c0_3 = arith.constant 0 : index
    %c0_4 = arith.constant 0 : index
    %3 = memref.load %arg2[%c0_3, %c0_4] : memref<1x1xf32, #tpu.memory_space<smem>>
    memref.store %2, %arg2[%c0_3, %c0_4] : memref<1x1xf32, #tpu.memory_space<smem>>
    return
  }
}

</mosaic_0001>

<llo_original>
// kernel: module_forward.1
$region0: #{module_forward.1}
  #allocation0 [shape = 'u32[]', space=smem, size = 0x4, offset = 0x4, fixed_abs, tag = 'smem constant byte address 0x4 - core index']
  #allocation1 [shape = 'u32[144,128]{1,0:T(1,128)}', space=vmem, size = 0x12000, scoped, tag = 'internal scratch']
  #allocation2 [shape = 'f32[1,1]{1,0:T(1,128)S(6)}', space=smem, size = 0x200, scoped, tag = 'scoped memory for module_forward.1']
  #allocation3 [shape = 'f32[1,1]{1,0:T(1,128)S(6)}', space=smem, size = 0x200, scoped, tag = 'scoped memory for module_forward.1']
  %s0 = inlined_call_operand.<no memory space> [shape: f32[1,1], index: 0, kind: input, shape index: {}]
  %s1 = inlined_call_operand.<no memory space> [shape: f32[1,1], index: 1, kind: input, shape index: {}]
  %s2 = inlined_call_operand.hbm [shape: f32[1,1], index: 2, kind: output, shape index: {}]
  %s3 = sld [smem:[#allocation0]]
  $region18: #{module_forward.1} parent=0
    _
  %s5 = ssub.s32 1, %s3
  %s6 = scalar_select 0, %s5, %s3
  %7 = sst [smem:[#allocation2]] %s0
  %8 = sst [smem:[#allocation3]] %s1
  $region1: #{module_forward.1} parent=0
    #allocation4 [shape = 'u8[512]{0}', space=smem, size = 0x200, scoped, tag = 'output window, operand 0, single buffered']
    #allocation5 [shape = 's32[1]{0}', space=sflag, size = 0x4, scoped, tag = 'scoped memory for module_forward.1']
    %9 = vsyncpa [#allocation5], 0
    // Predicated region
    $region2: #{module_forward.1} parent=1 // pred_check
      _
    $region3: #{module_forward.1} parent=1 // pred_check_branch
      %11 = sbr.rel (0) target = $region5
    $region4: #{module_forward.1} parent=1 // pred_region
      _
    $region5: #{module_forward.1} parent=1 // pred_fallthru
      _
    // Predicated region
    $region6: #{module_forward.1} parent=1 // pred_check
      _
    $region7: #{module_forward.1} parent=1 // pred_check_branch
      %13 = sbr.rel (0) target = $region9
    $region8: #{module_forward.1} parent=1 // pred_region
      _
    $region9: #{module_forward.1} parent=1 // pred_fallthru
      _
    %s14 = sld [smem:[#allocation2]]
    %s15 = sld [smem:[#allocation3]]
    %s16 = sadd.f32 %s14, %s15
    %s17 = scalar_lea.smem [#allocation4], 0
    %18 = sst [smem:[%s17]] %s16
    // Predicated region
    $region10: #{module_forward.1} parent=1 // pred_check
      _
    $region11: #{module_forward.1} parent=1 // pred_check_branch
      %20 = sbr.rel (0) target = $region13
    $region12: #{module_forward.1} parent=1 // pred_region
      %s22 = ssub.s32 16, 16
      %23 = vsyncadd [#allocation5], %s22
      %26 = dma.smem_to_hbm [#allocation4], 16, %s2, [#allocation5]
    $region13: #{module_forward.1} parent=1 // pred_fallthru
      _
    // Predicated region
    $region14: #{module_forward.1} parent=1 // pred_check
      _
    $region15: #{module_forward.1} parent=1 // pred_check_branch
      %28 = sbr.rel (0) target = $region17
    $region16: #{module_forward.1} parent=1 // pred_region
      %29 = dma.done [#allocation5], 16
    $region17: #{module_forward.1} parent=1 // pred_fallthru
      _
    %30 = sfence
    %31 = vsyncpa [#allocation5], 1

</llo_original>
